<compile_context>
chip_gen: v6e
topology: v6e:2x2x1
jax: 0.10.0
libtpu: 0.0.40
codegen_flags: <defaults>
</compile_context>

<pallas_src>
import functools

import jax
import jax.numpy as jnp
from jax.experimental import pallas as pl
from jax.experimental.pallas import tpu as pltpu


def _round_up(x: int, m: int) -> int:
    return ((x + m - 1) // m) * m


def _orthogonal(key, shape, gain=1.0, dtype=jnp.float32):
    """Deterministic orthogonal init (same semantics as nn.init.orthogonal_)."""
    rows, cols = shape
    n = max(rows, cols)
    a = jax.random.normal(key, (n, min(rows, cols)), dtype=jnp.float32)
    q, r = jnp.linalg.qr(a)
    d = jnp.sign(jnp.diagonal(r))
    d = jnp.where(d == 0, 1.0, d)  # sign(0) would zero a column of Q
    q = q * d[None, :]
    q = q[:rows, :cols] if rows >= cols else q[:cols, :rows].T
    return (gain * q).astype(dtype)


def qfunction_kernel(obs_ref, act_ref, w1o_ref, w1a_ref, b1_ref,
                     w2_ref, b2_ref, w3_ref, b3_ref, out_ref):
    """Fused 3-layer MLP on one batch tile.

    h1 = relu(obs @ W1_obs + act @ W1_act + b1)
    h2 = relu(h1 @ W2 + b2)
    q  = sum(h2 * w3_row, -1) + b3            # N=1 layer as a VPU reduction
    """
    h1 = jnp.dot(obs_ref[...], w1o_ref[...], preferred_element_type=jnp.float32)
    h1 = h1 + jnp.dot(act_ref[...], w1a_ref[...],
                      preferred_element_type=jnp.float32)
    h1 = jnp.maximum(h1 + b1_ref[...], 0.0)              # f32 bias/ReLU (v5e-safe)

    h2 = jnp.dot(h1.astype(w2_ref.dtype), w2_ref[...],
                 preferred_element_type=jnp.float32)
    h2 = jnp.maximum(h2 + b2_ref[...], 0.0)

    # Final layer has a single output column: a 1-column MXU pass would use
    # 1/256 of the MXU and still pay push/pop latency; ride the idle VPU/XLU
    # slots instead (w3 kept f32).
    q = jnp.sum(h2 * w3_ref[...], axis=-1, keepdims=True)  # (TILE_B, 1)
    out_ref[...] = q + b3_ref[...]


def init_qfunction_params(key, obs_dim, action_dim, hidden_dim, *, lane_pad=128):
    """weight_init semantics: orthogonal weights (gain=1), zero biases.

    W1 is initialized over the full (hidden, obs_dim+action_dim) matrix (same
    distribution as the PyTorch module) and then split column-wise into the
    obs / action halves used by the kernel.

    Hidden features are zero-padded to a multiple of `lane_pad` (default 128,
    the TPU lane width). Padded units contribute exactly 0 (zero W columns /
    rows, zero bias, zero w3 entries), so the forward is numerically identical
    to the unpadded module while every VPU/MXU op uses full lanes.
    """
    in_dim = obs_dim + action_dim
    k1, k2, k3 = jax.random.split(key, 3)
    w1_full = _orthogonal(k1, (hidden_dim, in_dim)).T        # (in_dim, hidden)
    w1_obs = w1_full[:obs_dim]                               # (obs_dim, hidden)
    w1_act = w1_full[obs_dim:]                               # (action_dim, hidden)
    w2 = _orthogonal(k2, (hidden_dim, hidden_dim)).T         # (hidden, hidden)
    w3_row = _orthogonal(k3, (1, hidden_dim))                # (1, hidden) row
    b1 = jnp.zeros((1, hidden_dim), jnp.float32)
    b2 = jnp.zeros((1, hidden_dim), jnp.float32)
    b3 = jnp.zeros((1, 1), jnp.float32)

    h_pad = _round_up(hidden_dim, lane_pad) if lane_pad else hidden_dim
    if h_pad != hidden_dim:
        ph = h_pad - hidden_dim
        w1_obs = jnp.pad(w1_obs, ((0, 0), (0, ph)))
        w1_act = jnp.pad(w1_act, ((0, 0), (0, ph)))
        w2 = jnp.pad(w2, ((0, ph), (0, ph)))
        w3_row = jnp.pad(w3_row, ((0, 0), (0, ph)))
        b1 = jnp.pad(b1, ((0, 0), (0, ph)))
        b2 = jnp.pad(b2, ((0, 0), (0, ph)))
    return (w1_obs, w1_act, b1, w2, b2, w3_row, b3)


def prepare_qfunction_params(params, compute_dtype=jnp.bfloat16):
    """Cast the MXU-operand weights ONCE, outside the per-step forward.

    Doing this per call would re-write + re-read every weight matrix in HBM
    each forward (the dominant traffic term at SAC-typical shapes). Biases,
    the w3 row and b3 stay f32: all elementwise math runs in f32 (v5e's VPU
    has no bf16).
    """
    w1o, w1a, b1, w2, b2, w3_row, b3 = params
    return (w1o.astype(compute_dtype),
            w1a.astype(compute_dtype),
            b1.astype(jnp.float32),
            w2.astype(compute_dtype),
            b2.astype(jnp.float32),
            w3_row.astype(jnp.float32),
            b3.astype(jnp.float32))


@functools.partial(jax.jit, static_argnames=("tile_b",))
def qfunction_forward(obs, action, params, *, tile_b=512):
    """Q(obs, action) via a batch-tiled fused Pallas MLP kernel.

    `params` must come from prepare_qfunction_params (weights pre-cast to the
    MXU compute dtype; f32 accumulation inside the kernel regardless).
    tile_b: max batch-tile rows. 512 is a good default; on v6e (128 MiB VMEM)
    1024 also fits comfortably in bf16 for large replay batches.
    """
    assert obs.shape[0] == action.shape[0]
    B, obs_dim = obs.shape
    action_dim = action.shape[1]
    w1o, w1a, b1, w2, b2, w3_row, b3 = params
    hidden_dim = w2.shape[0]
    compute_dtype = w1o.dtype

    # Only the small per-call activations get converted here; weights were
    # pre-cast once outside the forward.
    obs = obs.astype(compute_dtype)
    action = action.astype(compute_dtype)

    # Batch tile: sublane-aligned. bf16 packs 2 rows per sublane -> align 16.
    align = 16 if jnp.dtype(compute_dtype).itemsize < 4 else 8
    tile = _round_up(min(tile_b, _round_up(B, align)), align)
    b_pad = _round_up(B, tile)
    # Prefer >= 2 grid points so the "parallel" batch axis can shard across
    # v7x's 2 TensorCores (no effect on single-TC v5e/v6e).
    if b_pad // tile < 2 and tile >= 2 * align:
        tile = _round_up(pl.cdiv(tile, 2), align)
        b_pad = _round_up(B, tile)
    if b_pad != B:
        pad = b_pad - B
        obs = jnp.pad(obs, ((0, pad), (0, 0)))
        action = jnp.pad(action, ((0, pad), (0, 0)))
    num_tiles = b_pad // tile

    # Weights/biases: constant index_map -> the pipeliner sees the same block
    # revisited every step, so they are DMA'd once and stay VMEM-resident.
    const = lambda i: (0, 0)
    batch = lambda i: (i, 0)

    in_specs = [
        pl.BlockSpec((tile, obs_dim), batch),           # obs tile
        pl.BlockSpec((tile, action_dim), batch),        # action tile
        pl.BlockSpec((obs_dim, hidden_dim), const),     # W1_obs
        pl.BlockSpec((action_dim, hidden_dim), const),  # W1_act
        pl.BlockSpec((1, hidden_dim), const),           # b1
        pl.BlockSpec((hidden_dim, hidden_dim), const),  # W2
        pl.BlockSpec((1, hidden_dim), const),           # b2
        pl.BlockSpec((1, hidden_dim), const),           # w3 (row)
        pl.BlockSpec((1, 1), const),                    # b3
    ]
    out_spec = pl.BlockSpec((tile, 1), batch)

    bytes_per = jnp.dtype(compute_dtype).itemsize
    flops = 2 * b_pad * ((obs_dim + action_dim) * hidden_dim
                         + hidden_dim * hidden_dim + hidden_dim)
    bytes_accessed = (b_pad * (obs_dim + action_dim) * bytes_per
                      + (obs_dim + action_dim + hidden_dim) * hidden_dim * bytes_per
                      + (3 * hidden_dim + 1) * 4
                      + b_pad * 4)

    q = pl.pallas_call(
        qfunction_kernel,
        out_shape=jax.ShapeDtypeStruct((b_pad, 1), jnp.float32),
        grid=(num_tiles,),
        in_specs=in_specs,
        out_specs=out_spec,
        compiler_params=pltpu.CompilerParams(
            dimension_semantics=("parallel",),
            # Above the 16 MiB (v5e) / 32 MiB (v6e, v7x) scoped defaults,
            # below v7x's 64 MiB physical VMEM.
            vmem_limit_bytes=48 * 1024 * 1024),
        cost_estimate=pl.CostEstimate(
            flops=flops, transcendentals=0, bytes_accessed=bytes_accessed),
    )(obs, action, w1o, w1a, b1, w2, b2, w3_row, b3)

    return q[:B]


def qfunction_reference(obs, action, params):
    """Pure-JAX f32 reference for correctness checking."""
    w1o, w1a, b1, w2, b2, w3_row, b3 = [p.astype(jnp.float32) for p in params]
    x = jnp.concatenate([obs.astype(jnp.float32),
                         action.astype(jnp.float32)], axis=1)
    w1 = jnp.concatenate([w1o, w1a], axis=0)
    h1 = jnp.maximum(x @ w1 + b1, 0.0)
    h2 = jnp.maximum(h1 @ w2 + b2, 0.0)
    return h2 @ w3_row.T + b3


if __name__ == "__main__":
    # Small shapes consistent with the module's forward.
    B, OBS_DIM, ACTION_DIM, HIDDEN_DIM = 8, 24, 8, 32

    key = jax.random.PRNGKey(0)
    k_obs, k_act, k_params = jax.random.split(key, 3)

    obs = jax.random.normal(k_obs, (B, OBS_DIM), dtype=jnp.float32)
    action = jax.random.normal(k_act, (B, ACTION_DIM), dtype=jnp.float32)
    params = init_qfunction_params(k_params, OBS_DIM, ACTION_DIM, HIDDEN_DIM)
    q_ref = qfunction_reference(obs, action, params)

    # 1) f32 MXU path: tight tolerance vs. the pure-JAX reference.
    params_f32 = prepare_qfunction_params(params, jnp.float32)
    q = jax.block_until_ready(qfunction_forward(obs, action, params_f32))
    assert q.shape == (B, 1), q.shape
    assert jnp.allclose(q, q_ref, atol=1e-5, rtol=1e-5), (q, q_ref)

    # 2) Non-multiple-of-8 batch with a tiny explicit tile: exercises the
    #    multi-tile grid path + padding/slicing.
    B2 = 20
    obs2 = jax.random.normal(jax.random.PRNGKey(1), (B2, OBS_DIM), jnp.float32)
    act2 = jax.random.normal(jax.random.PRNGKey(2), (B2, ACTION_DIM), jnp.float32)
    q2 = jax.block_until_ready(
        qfunction_forward(obs2, act2, params_f32, tile_b=8))
    q2_ref = qfunction_reference(obs2, act2, params)
    assert q2.shape == (B2, 1), q2.shape
    assert jnp.allclose(q2, q2_ref, atol=1e-5, rtol=1e-5), (q2, q2_ref)

    # 3) Default bf16-operand path (f32 accumulation): looser tolerance —
    #    numerical drift from bf16 MXU inputs, not a functional difference.
    params_bf16 = prepare_qfunction_params(params)  # bfloat16 by default
    q3 = jax.block_until_ready(qfunction_forward(obs, action, params_bf16))
    assert q3.shape == (B, 1), q3.shape
    assert jnp.allclose(q3, q_ref, atol=5e-2, rtol=5e-2), (q3, q_ref)

    print("KERNEL_OK")
</pallas_src>

<mosaic_0001>
module attributes {stable_mosaic.version = 11 : i64} {
  func.func @qfunction_kernel(%arg0: i32, %arg1: memref<8x24xf32, #tpu.memory_space<vmem>>, %arg2: memref<8x8xf32, #tpu.memory_space<vmem>>, %arg3: memref<24x128xf32, #tpu.memory_space<vmem>>, %arg4: memref<8x128xf32, #tpu.memory_space<vmem>>, %arg5: memref<1x128xf32, #tpu.memory_space<vmem>>, %arg6: memref<128x128xf32, #tpu.memory_space<vmem>>, %arg7: memref<1x128xf32, #tpu.memory_space<vmem>>, %arg8: memref<1x128xf32, #tpu.memory_space<vmem>>, %arg9: memref<1x1xf32, #tpu.memory_space<vmem>>, %arg10: memref<8x1xf32, #tpu.memory_space<vmem>>) attributes {dimension_semantics = [#tpu.dimension_semantics<parallel>], iteration_bounds = array<i64: 1>, scalar_prefetch = 0 : i64, scratch_operands = 0 : i64, tpu.core_type = #tpu.core_type<tc>, window_params = [{transform_indices = @transform_0, window_bounds = array<i64: 8, 24>}, {transform_indices = @transform_1, window_bounds = array<i64: 8, 8>}, {pipeline_mode = #tpu.pipeline_mode<synchronous>, transform_indices = @transform_2, window_bounds = array<i64: 24, 128>}, {pipeline_mode = #tpu.pipeline_mode<synchronous>, transform_indices = @transform_3, window_bounds = array<i64: 8, 128>}, {pipeline_mode = #tpu.pipeline_mode<synchronous>, transform_indices = @transform_4, window_bounds = array<i64: 1, 128>}, {pipeline_mode = #tpu.pipeline_mode<synchronous>, transform_indices = @transform_5, window_bounds = array<i64: 128, 128>}, {pipeline_mode = #tpu.pipeline_mode<synchronous>, transform_indices = @transform_6, window_bounds = array<i64: 1, 128>}, {pipeline_mode = #tpu.pipeline_mode<synchronous>, transform_indices = @transform_7, window_bounds = array<i64: 1, 128>}, {pipeline_mode = #tpu.pipeline_mode<synchronous>, transform_indices = @transform_8, window_bounds = array<i64: 1, 1>}, {transform_indices = @transform_9, window_bounds = array<i64: 8, 1>}]} {
    %c0 = arith.constant 0 : index
    %c0_0 = arith.constant 0 : index
    %0 = vector.load %arg1[%c0, %c0_0] : memref<8x24xf32, #tpu.memory_space<vmem>>, vector<8x24xf32>
    %c0_1 = arith.constant 0 : index
    %c0_2 = arith.constant 0 : index
    %1 = vector.load %arg3[%c0_1, %c0_2] : memref<24x128xf32, #tpu.memory_space<vmem>>, vector<24x128xf32>
    %cst = arith.constant dense<0.000000e+00> : vector<8x128xf32>
    %2 = tpu.matmul %0, %1, %cst {dimension_numbers = #tpu.dot_dimension_numbers<[1], [0], [0], [1], [0, 0, 1, 1], [], []>} : vector<8x24xf32>, vector<24x128xf32>, vector<8x128xf32> -> vector<8x128xf32>
    %c0_3 = arith.constant 0 : index
    %c0_4 = arith.constant 0 : index
    %3 = vector.load %arg2[%c0_3, %c0_4] : memref<8x8xf32, #tpu.memory_space<vmem>>, vector<8x8xf32>
    %c0_5 = arith.constant 0 : index
    %c0_6 = arith.constant 0 : index
    %4 = vector.load %arg4[%c0_5, %c0_6] : memref<8x128xf32, #tpu.memory_space<vmem>>, vector<8x128xf32>
    %cst_7 = arith.constant dense<0.000000e+00> : vector<8x128xf32>
    %5 = tpu.matmul %3, %4, %cst_7 {dimension_numbers = #tpu.dot_dimension_numbers<[1], [0], [0], [1], [0, 0, 1, 1], [], []>} : vector<8x8xf32>, vector<8x128xf32>, vector<8x128xf32> -> vector<8x128xf32>
    %6 = arith.addf %2, %5 : vector<8x128xf32>
    %c0_8 = arith.constant 0 : index
    %c0_9 = arith.constant 0 : index
    %7 = vector.load %arg5[%c0_8, %c0_9] : memref<1x128xf32, #tpu.memory_space<vmem>>, vector<1x128xf32>
    %8 = vector.broadcast %7 : vector<1x128xf32> to vector<8x128xf32>
    %9 = arith.addf %6, %8 : vector<8x128xf32>
    %cst_10 = arith.constant 0.000000e+00 : f32
    %10 = vector.broadcast %cst_10 : f32 to vector<8x128xf32>
    %11 = arith.maximumf %9, %10 : vector<8x128xf32>
    %c0_11 = arith.constant 0 : index
    %c0_12 = arith.constant 0 : index
    %12 = vector.load %arg6[%c0_11, %c0_12] : memref<128x128xf32, #tpu.memory_space<vmem>>, vector<128x128xf32>
    %cst_13 = arith.constant dense<0.000000e+00> : vector<8x128xf32>
    %13 = tpu.matmul %11, %12, %cst_13 {dimension_numbers = #tpu.dot_dimension_numbers<[1], [0], [0], [1], [0, 0, 1, 1], [], []>} : vector<8x128xf32>, vector<128x128xf32>, vector<8x128xf32> -> vector<8x128xf32>
    %c0_14 = arith.constant 0 : index
    %c0_15 = arith.constant 0 : index
    %14 = vector.load %arg7[%c0_14, %c0_15] : memref<1x128xf32, #tpu.memory_space<vmem>>, vector<1x128xf32>
    %15 = vector.broadcast %14 : vector<1x128xf32> to vector<8x128xf32>
    %16 = arith.addf %13, %15 : vector<8x128xf32>
    %cst_16 = arith.constant 0.000000e+00 : f32
    %17 = vector.broadcast %cst_16 : f32 to vector<8x128xf32>
    %18 = arith.maximumf %16, %17 : vector<8x128xf32>
    %c0_17 = arith.constant 0 : index
    %c0_18 = arith.constant 0 : index
    %19 = vector.load %arg8[%c0_17, %c0_18] : memref<1x128xf32, #tpu.memory_space<vmem>>, vector<1x128xf32>
    %20 = vector.broadcast %19 : vector<1x128xf32> to vector<8x128xf32>
    %21 = arith.mulf %18, %20 : vector<8x128xf32>
    %cst_19 = arith.constant dense<0.000000e+00> : vector<8xf32>
    %22 = vector.multi_reduction <add>, %21, %cst_19 [1] : vector<8x128xf32> to vector<8xf32>
    %23 = vector.shape_cast %22 : vector<8xf32> to vector<8x1xf32>
    %c0_20 = arith.constant 0 : index
    %c0_21 = arith.constant 0 : index
    %24 = vector.load %arg9[%c0_20, %c0_21] : memref<1x1xf32, #tpu.memory_space<vmem>>, vector<1x1xf32>
    %25 = vector.broadcast %24 : vector<1x1xf32> to vector<8x1xf32>
    %26 = arith.addf %23, %25 : vector<8x1xf32>
    %c0_22 = arith.constant 0 : index
    %c0_23 = arith.constant 0 : index
    %27 = vector.load %arg10[%c0_22, %c0_23] : memref<8x1xf32, #tpu.memory_space<vmem>>, vector<8x1xf32>
    tpu.vector_store %arg10[%c0_22, %c0_23], %26 {strides = array<i32>} : memref<8x1xf32, #tpu.memory_space<vmem>>, vector<8x1xf32>,
    return
  }
  func.func @transform_0(%arg0: i32) -> (i32, i32) {
    %c0_i32 = arith.constant 0 : i32
    %c0_i32_0 = arith.constant 0 : i32
    return %arg0, %c0_i32 : i32, i32
  }
  func.func @transform_1(%arg0: i32) -> (i32, i32) {
    %c0_i32 = arith.constant 0 : i32
    %c0_i32_0 = arith.constant 0 : i32
    return %arg0, %c0_i32 : i32, i32
  }
  func.func @transform_2(%arg0: i32) -> (i32, i32) {
    %c0_i32 = arith.constant 0 : i32
    %c0_i32_0 = arith.constant 0 : i32
    %c0_i32_1 = arith.constant 0 : i32
    return %c0_i32, %c0_i32_0 : i32, i32
  }
  func.func @transform_3(%arg0: i32) -> (i32, i32) {
    %c0_i32 = arith.constant 0 : i32
    %c0_i32_0 = arith.constant 0 : i32
    %c0_i32_1 = arith.constant 0 : i32
    return %c0_i32, %c0_i32_0 : i32, i32
  }
  func.func @transform_4(%arg0: i32) -> (i32, i32) {
    %c0_i32 = arith.constant 0 : i32
    %c0_i32_0 = arith.constant 0 : i32
    %c0_i32_1 = arith.constant 0 : i32
    return %c0_i32, %c0_i32_0 : i32, i32
  }
  func.func @transform_5(%arg0: i32) -> (i32, i32) {
    %c0_i32 = arith.constant 0 : i32
    %c0_i32_0 = arith.constant 0 : i32
    %c0_i32_1 = arith.constant 0 : i32
    return %c0_i32, %c0_i32_0 : i32, i32
  }
  func.func @transform_6(%arg0: i32) -> (i32, i32) {
    %c0_i32 = arith.constant 0 : i32
    %c0_i32_0 = arith.constant 0 : i32
    %c0_i32_1 = arith.constant 0 : i32
    return %c0_i32, %c0_i32_0 : i32, i32
  }
  func.func @transform_7(%arg0: i32) -> (i32, i32) {
    %c0_i32 = arith.constant 0 : i32
    %c0_i32_0 = arith.constant 0 : i32
    %c0_i32_1 = arith.constant 0 : i32
    return %c0_i32, %c0_i32_0 : i32, i32
  }
  func.func @transform_8(%arg0: i32) -> (i32, i32) {
    %c0_i32 = arith.constant 0 : i32
    %c0_i32_0 = arith.constant 0 : i32
    %c0_i32_1 = arith.constant 0 : i32
    return %c0_i32, %c0_i32_0 : i32, i32
  }
  func.func @transform_9(%arg0: i32) -> (i32, i32) {
    %c0_i32 = arith.constant 0 : i32
    %c0_i32_0 = arith.constant 0 : i32
    return %arg0, %c0_i32 : i32, i32
  }
}

</mosaic_0001>

<llo_original>
// kernel: qfunction_forward.1
$region0: #{qfunction_forward.1}
  #allocation0 [shape = 'u32[]', space=smem, size = 0x4, offset = 0x4, fixed_abs, tag = 'smem constant byte address 0x4 - core index']
  #allocation1 [shape = 'u32[144,128]{1,0:T(1,128)}', space=vmem, size = 0x12000, scoped, tag = 'internal scratch']
  #allocation2 [shape = 'f32[1,1]{1,0:T(1,128)S(1)}', space=vmem, size = 0x200, scoped, tag = 'scoped memory for qfunction_forward.1']
  %s0 = inlined_call_operand.hbm [shape: f32[8,24], index: 0, kind: input, shape index: {}]
  %s1 = inlined_call_operand.hbm [shape: f32[8,8], index: 1, kind: input, shape index: {}]
  %s2 = inlined_call_operand.hbm [shape: f32[24,128], index: 2, kind: input, shape index: {}]
  %s3 = inlined_call_operand.hbm [shape: f32[8,128], index: 3, kind: input, shape index: {}]
  %s4 = inlined_call_operand.vmem [shape: f32[1,128], index: 4, kind: input, shape index: {}]
  %s5 = inlined_call_operand.hbm [shape: f32[128,128], index: 5, kind: input, shape index: {}]
  %s6 = inlined_call_operand.vmem [shape: f32[1,128], index: 6, kind: input, shape index: {}]
  %s7 = inlined_call_operand.vmem [shape: f32[1,128], index: 7, kind: input, shape index: {}]
  %s8 = inlined_call_operand.<no memory space> [shape: f32[1,1], index: 8, kind: input, shape index: {}]
  %s9 = inlined_call_operand.vmem [shape: f32[8,1], index: 9, kind: output, shape index: {}]
  %s10 = sld [smem:[#allocation0]]
  $region66: #{qfunction_forward.1} parent=0
    _
  %s12 = ssub.s32 1, %s10
  %s13 = scalar_select 0, %s12, %s10
  %v14 = vstv %s8
  %15 = vst [vmem:[#allocation2] sm:$0x1] %v14
  $region1: #{qfunction_forward.1} parent=0
    #allocation3 [shape = 'u8[4096]{0}', space=vmem, size = 0x1000, scoped, tag = 'input window, operand 0, single buffered']
    #allocation4 [shape = 's32[1]{0}', space=sflag, size = 0x4, scoped, tag = 'scoped memory for qfunction_forward.1']
    #allocation5 [shape = 'u8[4096]{0}', space=vmem, size = 0x1000, scoped, tag = 'input window, operand 1, single buffered']
    #allocation6 [shape = 's32[1]{0}', space=sflag, size = 0x4, scoped, tag = 'scoped memory for qfunction_forward.1']
    #allocation7 [shape = 'u8[12288]{0}', space=vmem, size = 0x3000, scoped, tag = 'input window, operand 2, single buffered']
    #allocation8 [shape = 'u8[4096]{0}', space=vmem, size = 0x1000, scoped, tag = 'input window, operand 3, single buffered']
    #allocation9 [shape = 's32[1]{0}', space=sflag, size = 0x4, scoped, tag = 'scoped memory for qfunction_forward.1']
    #allocation10 [shape = 'u8[65536]{0}', space=vmem, size = 0x10000, scoped, tag = 'input window, operand 5, single buffered']
    %16 = vsyncpa [#allocation4], 0
    %17 = vsyncpa [#allocation6], 0
    %18 = vsyncpa [#allocation9], 0
    // Predicated region
    $region2: #{qfunction_forward.1} parent=1 // pred_check
      _
    $region3: #{qfunction_forward.1} parent=1 // pred_check_branch
      %20 = sbr.rel (0) target = $region5
    $region4: #{qfunction_forward.1} parent=1 // pred_region
      %s22 = ssub.s32 128, 128
      %23 = vsyncadd [#allocation4], %s22
      %s25 = sshll.u32 [#allocation3], 4
      %s26 = int_to_ptr.vmem [resolvable:$true] %s25
      %28 = dma.hbm_to_vmem [thread:$0]  %s0, 128, %s26, [#allocation4]
    $region5: #{qfunction_forward.1} parent=1 // pred_fallthru
      _
    // Predicated region
    $region6: #{qfunction_forward.1} parent=1 // pred_check
      _
    $region7: #{qfunction_forward.1} parent=1 // pred_check_branch
      %30 = sbr.rel (0) target = $region9
    $region8: #{qfunction_forward.1} parent=1 // pred_region
      %s32 = ssub.s32 128, 128
      %33 = vsyncadd [#allocation6], %s32
      %s35 = sshll.u32 [#allocation5], 4
      %s36 = int_to_ptr.vmem [resolvable:$true] %s35
      %38 = dma.hbm_to_vmem [thread:$0]  %s1, 128, %s36, [#allocation6]
    $region9: #{qfunction_forward.1} parent=1 // pred_fallthru
      _
    // Predicated region
    $region10: #{qfunction_forward.1} parent=1 // pred_check
      _
    $region11: #{qfunction_forward.1} parent=1 // pred_check_branch
      %40 = sbr.rel (0) target = $region13
    $region12: #{qfunction_forward.1} parent=1 // pred_region
      %s42 = ssub.s32 384, 384
      %43 = vsyncadd [#allocation6], %s42
      %s44 = sshll.u32 [#allocation7], 4
      %s45 = int_to_ptr.vmem [resolvable:$true] %s44
      %50 = dma.hbm_to_vmem [thread:$0]  %s2, 384, %s45, [#allocation6], 128, 128, 8
    $region13: #{qfunction_forward.1} parent=1 // pred_fallthru
      _
    // Predicated region
    $region14: #{qfunction_forward.1} parent=1 // pred_check
      _
    $region15: #{qfunction_forward.1} parent=1 // pred_check_branch
      %52 = sbr.rel (0) target = $region17
    $region16: #{qfunction_forward.1} parent=1 // pred_region
      %s54 = ssub.s32 128, 128
      %55 = vsyncadd [#allocation9], %s54
      %s57 = sshll.u32 [#allocation8], 4
      %s58 = int_to_ptr.vmem [resolvable:$true] %s57
      %60 = dma.hbm_to_vmem [thread:$0]  %s3, 128, %s58, [#allocation9]
    $region17: #{qfunction_forward.1} parent=1 // pred_fallthru
      _
    // Predicated region
    $region18: #{qfunction_forward.1} parent=1 // pred_check
      _
    $region19: #{qfunction_forward.1} parent=1 // pred_check_branch
      %62 = sbr.rel (0) target = $region21
    $region20: #{qfunction_forward.1} parent=1 // pred_region
      _
    $region21: #{qfunction_forward.1} parent=1 // pred_fallthru
      _
    // Predicated region
    $region22: #{qfunction_forward.1} parent=1 // pred_check
      _
    $region23: #{qfunction_forward.1} parent=1 // pred_check_branch
      %64 = sbr.rel (0) target = $region25
    $region24: #{qfunction_forward.1} parent=1 // pred_region
      %s66 = ssub.s32 2048, 2048
      %67 = vsyncadd [#allocation9], %s66
      %s68 = sshll.u32 [#allocation10], 4
      %s69 = int_to_ptr.vmem [resolvable:$true] %s68
      %74 = dma.hbm_to_vmem [thread:$0]  %s5, 2048, %s69, [#allocation9], 128, 128, 8
    $region25: #{qfunction_forward.1} parent=1 // pred_fallthru
      _
    // Predicated region
    $region26: #{qfunction_forward.1} parent=1 // pred_check
      _
    $region27: #{qfunction_forward.1} parent=1 // pred_check_branch
      %76 = sbr.rel (0) target = $region29
    $region28: #{qfunction_forward.1} parent=1 // pred_region
      _
    $region29: #{qfunction_forward.1} parent=1 // pred_fallthru
      _
    // Predicated region
    $region30: #{qfunction_forward.1} parent=1 // pred_check
      _
    $region31: #{qfunction_forward.1} parent=1 // pred_check_branch
      %78 = sbr.rel (0) target = $region33
    $region32: #{qfunction_forward.1} parent=1 // pred_region
      _
    $region33: #{qfunction_forward.1} parent=1 // pred_fallthru
      _
    // Predicated region
    $region34: #{qfunction_forward.1} parent=1 // pred_check
      _
    $region35: #{qfunction_forward.1} parent=1 // pred_check_branch
      %80 = sbr.rel (0) target = $region37
    $region36: #{qfunction_forward.1} parent=1 // pred_region
      _
    $region37: #{qfunction_forward.1} parent=1 // pred_fallthru
      _
    // Predicated region
    $region38: #{qfunction_forward.1} parent=1 // pred_check
      _
    $region39: #{qfunction_forward.1} parent=1 // pred_check_branch
      %82 = sbr.rel (0) target = $region41
    $region40: #{qfunction_forward.1} parent=1 // pred_region
      %83 = dma.done [#allocation4], 128
    $region41: #{qfunction_forward.1} parent=1 // pred_fallthru
      _
    // Predicated region
    $region42: #{qfunction_forward.1} parent=1 // pred_check
      _
    $region43: #{qfunction_forward.1} parent=1 // pred_check_branch
      %85 = sbr.rel (0) target = $region45
    $region44: #{qfunction_forward.1} parent=1 // pred_region
      %86 = dma.done [#allocation6], 128
    $region45: #{qfunction_forward.1} parent=1 // pred_fallthru
      _
    // Predicated region
    $region46: #{qfunction_forward.1} parent=1 // pred_check
      _
    $region47: #{qfunction_forward.1} parent=1 // pred_check_branch
      %88 = sbr.rel (0) target = $region49
    $region48: #{qfunction_forward.1} parent=1 // pred_region
      %89 = dma.done [#allocation6], 384
    $region49: #{qfunction_forward.1} parent=1 // pred_fallthru
      _
    // Predicated region
    $region50: #{qfunction_forward.1} parent=1 // pred_check
      _
    $region51: #{qfunction_forward.1} parent=1 // pred_check_branch
      %91 = sbr.rel (0) target = $region53
    $region52: #{qfunction_forward.1} parent=1 // pred_region
      %92 = dma.done [#allocation9], 128
    $region53: #{qfunction_forward.1} parent=1 // pred_fallthru
      _
    // Predicated region
    $region54: #{qfunction_forward.1} parent=1 // pred_check
      _
    $region55: #{qfunction_forward.1} parent=1 // pred_check_branch
      %94 = sbr.rel (0) target = $region57
    $region56: #{qfunction_forward.1} parent=1 // pred_region
      %95 = dma.done [#allocation9], 2048
    $region57: #{qfunction_forward.1} parent=1 // pred_fallthru
      _
    %v96 = vld [vmem:[#allocation3] sm:$0xff]
    %v97 = vld [vmem:[#allocation7] sm:$0xff]
    %v98 = vld [vmem:[#allocation7 + $0x8] sm:$0xff]
    %v99 = vld [vmem:[#allocation7 + $0x10] sm:$0xff]
    %v100 = vld [vmem:[#allocation5] sm:$0xff]
    %v101 = vld [vmem:[#allocation8] sm:$0xff]
    %vm102 = vcmask 64512
    %v104 = vsel %vm102, %v100, 0
    %106 = vmatprep.subr.mxu0 0.0
    %107 = vmatpush1.msra.mxu0 0.0
    %108 = vmatprep.subr.mxu0 0.0
    %109 = vmatpush1.msra.mxu0 0.0
    %110 = vmatprep.subr.mxu0 0.0
    %111 = vmatpush1.msra.mxu0 0.0
    %112 = vmatprep.subr.mxu0 0.0
    %113 = vmatpush1.msra.mxu0 0.0
    %114 = vmatprep.subr.mxu0 0.0
    %115 = vmatpush1.msra.mxu0 0.0
    %116 = vmatprep.subr.mxu0 0.0
    %117 = vmatpush1.msra.mxu0 0.0
    %118 = vmatprep.subr.mxu0 0.0
    %119 = vmatpush1.msra.mxu0 0.0
    %120 = vmatprep.subr.mxu0 0.0
    %121 = vmatpush1.msra.mxu0 0.0
    %122 = vmatprep.subr.mxu0 0.0
    %123 = vmatpush1.msra.mxu0 0.0
    %124 = vmatprep.subr.mxu0 0.0
    %125 = vmatpush1.msra.mxu0 0.0
    %126 = vmatprep.subr.mxu0 0.0
    %127 = vmatpush1.msra.mxu0 0.0
    %128 = vmatprep.subr.mxu0 0.0
    %129 = vmatpush1.msra.mxu0 0.0
    %130 = vmatprep.subr.mxu0 0.0
    %131 = vmatpush1.msra.mxu0 0.0
    %132 = vmatprep.subr.mxu0 0.0
    %133 = vmatpush1.msra.mxu0 0.0
    %134 = vmatprep.subr.mxu0 0.0
    %135 = vmatpush1.msra.mxu0 0.0
    %136 = vmatprep.subr.mxu0 0.0
    %137 = vmatpush1.msra.mxu0 %v101
    %138 = vmatprep.subr.mxu0 0.0
    %139 = vmatpush2.msra.mxu0 0.0
    %140 = vmatprep.subr.mxu0 0.0
    %141 = vmatpush2.msra.mxu0 0.0
    %142 = vmatprep.subr.mxu0 0.0
    %143 = vmatpush2.msra.mxu0 0.0
    %144 = vmatprep.subr.mxu0 0.0
    %145 = vmatpush2.msra.mxu0 0.0
    %146 = vmatprep.subr.mxu0 0.0
    %147 = vmatpush2.msra.mxu0 0.0
    %148 = vmatprep.subr.mxu0 0.0
    %149 = vmatpush2.msra.mxu0 0.0
    %150 = vmatprep.subr.mxu0 0.0
    %151 = vmatpush2.msra.mxu0 0.0
    %152 = vmatprep.subr.mxu0 0.0
    %153 = vmatpush2.msra.mxu0 0.0
    %154 = vmatprep.subr.mxu0 0.0
    %155 = vmatpush2.msra.mxu0 0.0
    %156 = vmatprep.subr.mxu0 0.0
    %157 = vmatpush2.msra.mxu0 0.0
    %158 = vmatprep.subr.mxu0 0.0
    %159 = vmatpush2.msra.mxu0 0.0
    %160 = vmatprep.subr.mxu0 0.0
    %161 = vmatpush2.msra.mxu0 0.0
    %162 = vmatprep.subr.mxu0 0.0
    %163 = vmatpush2.msra.mxu0 0.0
    %164 = vmatprep.subr.mxu0 0.0
    %165 = vmatpush2.msra.mxu0 0.0
    %166 = vmatprep.subr.mxu0 0.0
    %167 = vmatpush2.msra.mxu0 0.0
    %168 = vmatprep.subr.mxu0 0.0
    %169 = vmatpush2.msra.mxu0 0.0
    %170 = vmatprep.mubr.f32.mxu0 0.0
    %171 = vmatmul.mubr.f32.gmra.mxu0 %v104
    %v172 = vpop.f32.mrf.mxu0
    %v173 = vadd.f32 0.0, %v172
    %v174 = vpop.f32.mrf.mxu0
    %175 = vdwg.mxu0
    %vm176 = vcmask 195584
    %v178 = vsel %vm176, %v96, 0
    %180 = vmatprep.subr.mxu0 0.0
    %181 = vmatpush1.msra.mxu0 0.0
    %182 = vmatprep.subr.mxu0 0.0
    %183 = vmatpush1.msra.mxu0 0.0
    %184 = vmatprep.subr.mxu0 0.0
    %185 = vmatpush1.msra.mxu0 0.0
    %186 = vmatprep.subr.mxu0 0.0
    %187 = vmatpush1.msra.mxu0 0.0
    %188 = vmatprep.subr.mxu0 0.0
    %189 = vmatpush1.msra.mxu0 0.0
    %190 = vmatprep.subr.mxu0 0.0
    %191 = vmatpush1.msra.mxu0 0.0
    %192 = vmatprep.subr.mxu0 0.0
    %193 = vmatpush1.msra.mxu0 0.0
    %194 = vmatprep.subr.mxu0 0.0
    %195 = vmatpush1.msra.mxu0 0.0
    %196 = vmatprep.subr.mxu0 0.0
    %197 = vmatpush1.msra.mxu0 0.0
    %198 = vmatprep.subr.mxu0 0.0
    %199 = vmatpush1.msra.mxu0 0.0
    %200 = vmatprep.subr.mxu0 0.0
    %201 = vmatpush1.msra.mxu0 0.0
    %202 = vmatprep.subr.mxu0 0.0
    %203 = vmatpush1.msra.mxu0 0.0
    %204 = vmatprep.subr.mxu0 0.0
    %205 = vmatpush1.msra.mxu0 0.0
    %206 = vmatprep.subr.mxu0 0.0
    %207 = vmatpush1.msra.mxu0 %v99
    %208 = vmatprep.subr.mxu0 0.0
    %209 = vmatpush1.msra.mxu0 %v98
    %210 = vmatprep.subr.mxu0 0.0
    %211 = vmatpush1.msra.mxu0 %v97
    %212 = vmatprep.subr.mxu0 0.0
    %213 = vmatpush2.msra.mxu0 0.0
    %214 = vmatprep.subr.mxu0 0.0
    %215 = vmatpush2.msra.mxu0 0.0
    %216 = vmatprep.subr.mxu0 0.0
    %217 = vmatpush2.msra.mxu0 0.0
    %218 = vmatprep.subr.mxu0 0.0
    %219 = vmatpush2.msra.mxu0 0.0
    %220 = vmatprep.subr.mxu0 0.0
    %221 = vmatpush2.msra.mxu0 0.0
    %222 = vmatprep.subr.mxu0 0.0
    %223 = vmatpush2.msra.mxu0 0.0
    %224 = vmatprep.subr.mxu0 0.0
    %225 = vmatpush2.msra.mxu0 0.0
    %226 = vmatprep.subr.mxu0 0.0
    %227 = vmatpush2.msra.mxu0 0.0
    %228 = vmatprep.subr.mxu0 0.0
    %229 = vmatpush2.msra.mxu0 0.0
    %230 = vmatprep.subr.mxu0 0.0
    %231 = vmatpush2.msra.mxu0 0.0
    %232 = vmatprep.subr.mxu0 0.0
    %233 = vmatpush2.msra.mxu0 0.0
    %234 = vmatprep.subr.mxu0 0.0
    %235 = vmatpush2.msra.mxu0 0.0
    %236 = vmatprep.subr.mxu0 0.0
    %237 = vmatpush2.msra.mxu0 0.0
    %238 = vmatprep.subr.mxu0 0.0
    %239 = vmatpush2.msra.mxu0 0.0
    %240 = vmatprep.subr.mxu0 0.0
    %241 = vmatpush2.msra.mxu0 0.0
    %242 = vmatprep.subr.mxu0 0.0
    %243 = vmatpush2.msra.mxu0 0.0
    %244 = vmatprep.mubr.f32.mxu0 0.0
    %245 = vmatmul.mubr.f32.gmra.mxu0 %v178
    %v246 = vpop.f32.mrf.mxu0
    %v247 = vadd.f32 %v173, %v246
    %v248 = vpop.f32.mrf.mxu0
    %249 = vdwg.mxu0
    %v250 = vld [vmem:[%s4] sm:$0x1]
    %v252 = vlaneseq
    %v253 = vshrl.u32 %v252, 7
    %v254 = vsub.s32 0, %v253
    %v255 = vrot.slane %v250, %v254
    %v257 = vadd.f32 %v247, %v255
    %v258 = vmax.f32 %v257, 0.0
    %v259 = vld [vmem:[#allocation10] sm:$0xff]
    %v260 = vld [vmem:[#allocation10 + $0x8] sm:$0xff]
    %v261 = vld [vmem:[#allocation10 + $0x10] sm:$0xff]
    %v262 = vld [vmem:[#allocation10 + $0x18] sm:$0xff]
    %v263 = vld [vmem:[#allocation10 + $0x20] sm:$0xff]
    %v264 = vld [vmem:[#allocation10 + $0x28] sm:$0xff]
    %v265 = vld [vmem:[#allocation10 + $0x30] sm:$0xff]
    %v266 = vld [vmem:[#allocation10 + $0x38] sm:$0xff]
    %v267 = vld [vmem:[#allocation10 + $0x40] sm:$0xff]
    %v268 = vld [vmem:[#allocation10 + $0x48] sm:$0xff]
    %v269 = vld [vmem:[#allocation10 + $0x50] sm:$0xff]
    %v270 = vld [vmem:[#allocation10 + $0x58] sm:$0xff]
    %v271 = vld [vmem:[#allocation10 + $0x60] sm:$0xff]
    %v272 = vld [vmem:[#allocation10 + $0x68] sm:$0xff]
    %v273 = vld [vmem:[#allocation10 + $0x70] sm:$0xff]
    %v274 = vld [vmem:[#allocation10 + $0x78] sm:$0xff]
    %v275 = vld [vmem:[%s6] sm:$0x1]
    %v277 = vlaneseq
    %v278 = vshrl.u32 %v277, 7
    %v279 = vsub.s32 0, %v278
    %v280 = vrot.slane %v275, %v279
    %282 = vmatprep.subr.mxu0 0.0
    %283 = vmatpush1.msra.mxu0 %v274
    %284 = vmatprep.subr.mxu0 0.0
    %285 = vmatpush1.msra.mxu0 %v273
    %286 = vmatprep.subr.mxu0 0.0
    %287 = vmatpush1.msra.mxu0 %v272
    %288 = vmatprep.subr.mxu0 0.0
    %289 = vmatpush1.msra.mxu0 %v271
    %290 = vmatprep.subr.mxu0 0.0
    %291 = vmatpush1.msra.mxu0 %v270
    %292 = vmatprep.subr.mxu0 0.0
    %293 = vmatpush1.msra.mxu0 %v269
    %294 = vmatprep.subr.mxu0 0.0
    %295 = vmatpush1.msra.mxu0 %v268
    %296 = vmatprep.subr.mxu0 0.0
    %297 = vmatpush1.msra.mxu0 %v267
    %298 = vmatprep.subr.mxu0 0.0
    %299 = vmatpush1.msra.mxu0 %v266
    %300 = vmatprep.subr.mxu0 0.0
    %301 = vmatpush1.msra.mxu0 %v265
    %302 = vmatprep.subr.mxu0 0.0
    %303 = vmatpush1.msra.mxu0 %v264
    %304 = vmatprep.subr.mxu0 0.0
    %305 = vmatpush1.msra.mxu0 %v263
    %306 = vmatprep.subr.mxu0 0.0
    %307 = vmatpush1.msra.mxu0 %v262
    %308 = vmatprep.subr.mxu0 0.0
    %309 = vmatpush1.msra.mxu0 %v261
    %310 = vmatprep.subr.mxu0 0.0
    %311 = vmatpush1.msra.mxu0 %v260
    %312 = vmatprep.subr.mxu0 0.0
    %313 = vmatpush1.msra.mxu0 %v259
    %314 = vmatprep.subr.mxu0 0.0
    %315 = vmatpush2.msra.mxu0 0.0
    %316 = vmatprep.subr.mxu0 0.0
    %317 = vmatpush2.msra.mxu0 0.0
    %318 = vmatprep.subr.mxu0 0.0
    %319 = vmatpush2.msra.mxu0 0.0
    %320 = vmatprep.subr.mxu0 0.0
    %321 = vmatpush2.msra.mxu0 0.0
    %322 = vmatprep.subr.mxu0 0.0
    %323 = vmatpush2.msra.mxu0 0.0
    %324 = vmatprep.subr.mxu0 0.0
    %325 = vmatpush2.msra.mxu0 0.0
    %326 = vmatprep.subr.mxu0 0.0
    %327 = vmatpush2.msra.mxu0 0.0
    %328 = vmatprep.subr.mxu0 0.0
    %329 = vmatpush2.msra.mxu0 0.0
    %330 = vmatprep.subr.mxu0 0.0
    %331 = vmatpush2.msra.mxu0 0.0
    %332 = vmatprep.subr.mxu0 0.0
    %333 = vmatpush2.msra.mxu0 0.0
    %334 = vmatprep.subr.mxu0 0.0
    %335 = vmatpush2.msra.mxu0 0.0
    %336 = vmatprep.subr.mxu0 0.0
    %337 = vmatpush2.msra.mxu0 0.0
    %338 = vmatprep.subr.mxu0 0.0
    %339 = vmatpush2.msra.mxu0 0.0
    %340 = vmatprep.subr.mxu0 0.0
    %341 = vmatpush2.msra.mxu0 0.0
    %342 = vmatprep.subr.mxu0 0.0
    %343 = vmatpush2.msra.mxu0 0.0
    %344 = vmatprep.subr.mxu0 0.0
    %345 = vmatpush2.msra.mxu0 0.0
    %346 = vmatprep.mubr.f32.mxu0 0.0
    %347 = vmatmul.mubr.f32.gmra.mxu0 %v258
    %v348 = vpop.f32.mrf.mxu0
    %v349 = vadd.f32 %v280, %v348
    %v350 = vpop.f32.mrf.mxu0
    %351 = vdwg.mxu0
    %v352 = vmax.f32 %v349, 0.0
    %v353 = vld [vmem:[%s7] sm:$0x1]
    %v355 = vlaneseq
    %v356 = vshrl.u32 %v355, 7
    %v357 = vsub.s32 0, %v356
    %v358 = vrot.slane %v353, %v357
    %v360 = vmul.f32 %v352, %v358
    %361 = vadd.xlane.f32.xlu0 %v360
    %v362 = vpop.xlane.xlu0 %361
    %v363 = vld [vmem:[#allocation2] sm:$0x1]
    %v365 = vlaneseq
    %v366 = vshrl.u32 %v365, 7
    %v367 = vsub.s32 0, %v366
    %v368 = vrot.slane %v363, %v367
    %v370 = vadd.f32 %v362, %v368
    %vm371 = vcmask 7168
    %372 = vst.msk [vmem:[%s9] sm:$0xff] %vm371, %v370
    // Predicated region
    $region58: #{qfunction_forward.1} parent=1 // pred_check
      _
    $region59: #{qfunction_forward.1} parent=1 // pred_check_branch
      %374 = sbr.rel (0) target = $region61
    $region60: #{qfunction_forward.1} parent=1 // pred_region
      _
    $region61: #{qfunction_forward.1} parent=1 // pred_fallthru
      _
    // Predicated region
    $region62: #{qfunction_forward.1} parent=1 // pred_check
      _
    $region63: #{qfunction_forward.1} parent=1 // pred_check_branch
      %376 = sbr.rel (0) target = $region65
    $region64: #{qfunction_forward.1} parent=1 // pred_region
      _
    $region65: #{qfunction_forward.1} parent=1 // pred_fallthru
      _
    %377 = vsyncpa [#allocation4], 1
    %378 = vsyncpa [#allocation6], 1
    %379 = vsyncpa [#allocation9], 1

</llo_original>
